<compile_context>
chip_gen: v7x
topology: tpu7x:2x2x1
jax: 0.10.0
libtpu: 0.0.40
codegen_flags: <defaults>
</compile_context>

<pallas_src>
import functools
import math

import jax
import jax.numpy as jnp
from jax import lax
from jax.experimental import pallas as pl
from jax.experimental.pallas import tpu as pltpu


CQ_PAD = 128  # query/key channel dim zero-padded to one full lane tile


def _flash_attn_kernel(q_ref, kt_ref, v_ref, xres_ref, gamma_ref, o_ref,
                       m_scr, acc_scr, *, c_out, n_real, block_kv, needs_mask):
    ki = pl.program_id(2)
    nk = pl.num_programs(2)

    # Reset online-softmax state at the start of every (batch, q-tile).
    @pl.when(ki == 0)
    def _():
        m_scr[...] = jnp.full_like(m_scr, -jnp.inf)
        acc_scr[...] = jnp.zeros_like(acc_scr)

    # Scores in "transposed" flash layout: keys on sublanes, queries on lanes.
    #   s[j, i] = k_j . q_i   (tk, tq) f32, bf16 MXU operands, K padded to 128.
    s = jnp.dot(kt_ref[0], q_ref[0], preferred_element_type=jnp.float32)
    if needs_mask:
        key_idx = block_kv * ki + lax.broadcasted_iota(jnp.int32, s.shape, 0)
        s = jnp.where(key_idx < n_real, s, -jnp.inf)

    m_prev = m_scr[...]                                             # (1, tq)
    m_new = jnp.maximum(m_prev, jnp.max(s, axis=0, keepdims=True))  # (1, tq)
    alpha = jnp.exp(m_prev - m_new)                                 # (1, tq)
    p = jnp.exp(s - m_new)                                          # (tk, tq)

    # v_ref carries an extra all-ones row (row c_out); the single MXU matmul
    # below therefore accumulates both the weighted values (rows < c_out) and
    # the softmax denominator l (row c_out).  alpha broadcast rescales both.
    acc_scr[...] = alpha * acc_scr[...] + jnp.dot(
        v_ref[0], p.astype(jnp.bfloat16), preferred_element_type=jnp.float32)
    m_scr[...] = m_new

    # Finalize: normalize, scale by gamma, add residual, lane-dense store.
    @pl.when(ki == nk - 1)
    def _():
        inv_l = pl.reciprocal(acc_scr[c_out:c_out + 1, :], approx=True)  # (1, tq)
        attn = acc_scr[:c_out, :] * inv_l                                # (C, tq)
        gamma = gamma_ref[0, 0]
        o_ref[0] = (gamma * attn
                    + xres_ref[0].astype(jnp.float32)).astype(o_ref.dtype)


def _round_up(x, m):
    return (x + m - 1) // m * m


def self_attn_pallas(x_nchw, wq, bq, wk, bk, wv, bv, gamma,
                     *, block_q=256, block_kv=256):
    """Self_Attn forward.  x_nchw: (B, C, W, H) float32 -> (B, C, W, H)."""
    B, C, W, H = x_nchw.shape
    N = W * H
    Cq = wq.shape[0]
    assert Cq <= CQ_PAD

    # (B, C, N) channel-major layout is a free reshape of NCHW (no transposes).
    x = x_nchw.reshape(B, C, N).astype(jnp.float32)

    # Tile sizes (multiples of 128 lanes); ragged N is padded + masked in-kernel.
    tq = min(block_q, _round_up(N, 128))
    tk = min(block_kv, _round_up(N, 128))
    n_pad = _round_up(N, math.lcm(tq, tk))
    needs_mask = n_pad != N

    # ---- 1x1-conv projections, computed once (plain XLA matmuls). ----------
    # Q/K weights zero-padded to 128 output channels -> aligned kernel tiles;
    # padded channels contribute exactly 0 to the energies.
    wq_p = jnp.zeros((CQ_PAD, C), jnp.float32).at[:Cq].set(wq)
    bq_p = jnp.zeros((CQ_PAD,), jnp.float32).at[:Cq].set(bq)
    wk_p = jnp.zeros((CQ_PAD, C), jnp.float32).at[:Cq].set(wk)
    bk_p = jnp.zeros((CQ_PAD,), jnp.float32).at[:Cq].set(bk)
    # Value projection augmented with a constant all-ones row (row C) so the
    # flash p@V matmul also produces the softmax denominator on the MXU.
    wv_a = jnp.concatenate([wv, jnp.zeros((1, C), jnp.float32)], axis=0)
    bv_a = jnp.concatenate([bv, jnp.ones((1,), jnp.float32)], axis=0)

    q = jnp.einsum('qc,bcn->bqn', wq_p, x) + bq_p[None, :, None]    # (B,128,N)
    kt = jnp.einsum('bcn,kc->bnk', x, wk_p) + bk_p[None, None, :]   # (B,N,128)
    v = jnp.einsum('vc,bcn->bvn', wv_a, x) + bv_a[None, :, None]    # (B,C+1,N)

    def pad_n(a, axis):
        if n_pad == N:
            return a
        pads = [(0, 0)] * a.ndim
        pads[axis] = (0, n_pad - N)
        return jnp.pad(a, pads)

    q_b = pad_n(q, 2).astype(jnp.bfloat16)      # (B, 128, Np)
    kt_b = pad_n(kt, 1).astype(jnp.bfloat16)    # (B, Np, 128)
    v_b = pad_n(v, 2).astype(jnp.bfloat16)      # (B, C+1, Np)
    x_b = pad_n(x, 2).astype(jnp.bfloat16)      # (B, C, Np)  residual stream
    gamma2 = jnp.asarray(gamma, jnp.float32).reshape(1, 1)

    kernel = functools.partial(_flash_attn_kernel, c_out=C, n_real=N,
                               block_kv=tk, needs_mask=needs_mask)

    out_pad = pl.pallas_call(
        kernel,
        out_shape=jax.ShapeDtypeStruct((B, C, n_pad), jnp.float32),
        grid_spec=pltpu.PrefetchScalarGridSpec(
            num_scalar_prefetch=0,
            grid=(B, n_pad // tq, n_pad // tk),
            in_specs=[
                pl.BlockSpec((1, CQ_PAD, tq), lambda b, qi, ki: (b, 0, qi)),  # Q
                pl.BlockSpec((1, tk, CQ_PAD), lambda b, qi, ki: (b, ki, 0)),  # K^T
                pl.BlockSpec((1, C + 1, tk), lambda b, qi, ki: (b, 0, ki)),   # V(+1s)
                pl.BlockSpec((1, C, tq), lambda b, qi, ki: (b, 0, qi)),       # x res
                pl.BlockSpec(memory_space=pltpu.MemorySpace.SMEM),            # gamma
            ],
            out_specs=pl.BlockSpec((1, C, tq), lambda b, qi, ki: (b, 0, qi)),
            scratch_shapes=[
                pltpu.VMEM((1, tq), jnp.float32),        # running max
                pltpu.VMEM((C + 1, tq), jnp.float32),    # value acc + denom row
            ],
        ),
        compiler_params=pltpu.CompilerParams(
            dimension_semantics=("parallel", "parallel", "arbitrary")),
    )(q_b, kt_b, v_b, x_b, gamma2)

    out = out_pad[:, :, :N] if n_pad != N else out_pad
    return out.reshape(B, C, W, H).astype(x_nchw.dtype)


def self_attn_reference(x, wq, bq, wk, bk, wv, bv, gamma):
    """Pure-JAX f32 transcription of the PyTorch forward (for verification)."""
    B, C, W, H = x.shape
    N = W * H
    xf = x.reshape(B, C, N)
    q = jnp.einsum('oc,bcn->bon', wq, xf) + bq[None, :, None]   # (B, Cq, N)
    k = jnp.einsum('oc,bcn->bon', wk, xf) + bk[None, :, None]   # (B, Cq, N)
    v = jnp.einsum('oc,bcn->bon', wv, xf) + bv[None, :, None]   # (B, C, N)
    energy = jnp.einsum('bcn,bcm->bnm', q, k)                   # (B, Nq, Nk)
    att = jax.nn.softmax(energy, axis=-1)
    out = jnp.einsum('bcm,bnm->bcn', v, att)                    # (B, C, N)
    return gamma * out.reshape(B, C, W, H) + x


if __name__ == "__main__":
    def make_params(key, C):
        Cq = C // 16
        ks = jax.random.split(key, 7)
        wq = jax.random.normal(ks[0], (Cq, C), jnp.float32) * 0.1
        wk = jax.random.normal(ks[1], (Cq, C), jnp.float32) * 0.1
        wv = jax.random.normal(ks[2], (C, C), jnp.float32) * 0.1
        bq = jax.random.normal(ks[3], (Cq,), jnp.float32) * 0.1
        bk = jax.random.normal(ks[4], (Cq,), jnp.float32) * 0.1
        bv = jax.random.normal(ks[5], (C,), jnp.float32) * 0.1
        return ks[6], (wq, bq, wk, bk, wv, bv)

    # PyTorch initializes gamma = 0 (output would trivially equal x); use a
    # nonzero deterministic gamma so the attention path is exercised.
    gamma = jnp.float32(0.5)
    k1, k2 = jax.random.split(jax.random.PRNGKey(0))

    # Case 1: aligned N (16*16=256); 128-blocks -> 2x2 flash tiles per batch.
    B, C, W, H = 2, 32, 16, 16
    kx, params = make_params(k1, C)
    x = jax.random.normal(kx, (B, C, W, H), jnp.float32)
    out = jax.block_until_ready(
        self_attn_pallas(x, *params, gamma, block_q=128, block_kv=128))
    ref = self_attn_reference(x, *params, gamma)
    assert out.shape == x.shape
    assert jnp.allclose(out, ref, atol=2e-2, rtol=2e-2), "case 1 mismatch"

    # Case 2: ragged N (12*12=144) -> padded to 256 with in-kernel key masking.
    B, C, W, H = 1, 16, 12, 12
    kx, params = make_params(k2, C)
    x = jax.random.normal(kx, (B, C, W, H), jnp.float32)
    out = jax.block_until_ready(
        self_attn_pallas(x, *params, gamma, block_q=128, block_kv=128))
    ref = self_attn_reference(x, *params, gamma)
    assert out.shape == x.shape
    assert jnp.allclose(out, ref, atol=2e-2, rtol=2e-2), "case 2 mismatch"

    print("KERNEL_OK")
</pallas_src>

<mosaic_0001>
module attributes {stable_mosaic.version = 11 : i64} {
  func.func @_flash_attn_kernel(%arg0: i32, %arg1: i32, %arg2: i32, %arg3: memref<1x128x128xbf16, #tpu.memory_space<vmem>>, %arg4: memref<1x128x128xbf16, #tpu.memory_space<vmem>>, %arg5: memref<1x33x128xbf16, #tpu.memory_space<vmem>>, %arg6: memref<1x32x128xbf16, #tpu.memory_space<vmem>>, %arg7: memref<1x1xf32, #tpu.memory_space<smem>>, %arg8: memref<1x32x128xf32, #tpu.memory_space<vmem>>, %arg9: memref<1x128xf32, #tpu.memory_space<vmem>>, %arg10: memref<33x128xf32, #tpu.memory_space<vmem>>) attributes {dimension_semantics = [#tpu.dimension_semantics<parallel>, #tpu.dimension_semantics<parallel>, #tpu.dimension_semantics<arbitrary>], iteration_bounds = array<i64: 2, 2, 2>, scalar_prefetch = 0 : i64, scratch_operands = 2 : i64, tpu.core_type = #tpu.core_type<tc>, window_params = [{transform_indices = @transform_0, window_bounds = array<i64: 1, 128, 128>}, {transform_indices = @transform_1, window_bounds = array<i64: 1, 128, 128>}, {transform_indices = @transform_2, window_bounds = array<i64: 1, 33, 128>}, {transform_indices = @transform_3, window_bounds = array<i64: 1, 32, 128>}, {transform_indices = @transform_4, window_bounds = array<i64: 1, 1>}, {transform_indices = @transform_5, window_bounds = array<i64: 1, 32, 128>}]} {
    %c0_i32 = arith.constant 0 : i32
    %0 = arith.cmpi eq, %arg2, %c0_i32 : i32
    %1 = arith.extui %0 : i1 to i32
    %c0_i32_0 = arith.constant 0 : i32
    %2 = arith.cmpi ne, %1, %c0_i32_0 : i32
    scf.if %2 {
      %cst_20 = arith.constant 0xFF800000 : f32
      %30 = vector.broadcast %cst_20 : f32 to vector<1x128xf32>
      %c0_21 = arith.constant 0 : index
      %c0_22 = arith.constant 0 : index
      %31 = vector.load %arg9[%c0_21, %c0_22] : memref<1x128xf32, #tpu.memory_space<vmem>>, vector<1x128xf32>
      tpu.vector_store %arg9[%c0_21, %c0_22], %30 {strides = array<i32>} : memref<1x128xf32, #tpu.memory_space<vmem>>, vector<1x128xf32>,
      %cst_23 = arith.constant 0.000000e+00 : f32
      %32 = vector.broadcast %cst_23 : f32 to vector<33x128xf32>
      %c0_24 = arith.constant 0 : index
      %c0_25 = arith.constant 0 : index
      %33 = vector.load %arg10[%c0_24, %c0_25] : memref<33x128xf32, #tpu.memory_space<vmem>>, vector<33x128xf32>
      tpu.vector_store %arg10[%c0_24, %c0_25], %32 {strides = array<i32>} : memref<33x128xf32, #tpu.memory_space<vmem>>, vector<33x128xf32>,
    } else {
    }
    %c0 = arith.constant 0 : index
    %c0_1 = arith.constant 0 : index
    %c0_2 = arith.constant 0 : index
    %3 = vector.load %arg4[%c0, %c0_1, %c0_2] : memref<1x128x128xbf16, #tpu.memory_space<vmem>>, vector<1x128x128xbf16>
    %4 = vector.shape_cast %3 : vector<1x128x128xbf16> to vector<128x128xbf16>
    %c0_3 = arith.constant 0 : index
    %c0_4 = arith.constant 0 : index
    %c0_5 = arith.constant 0 : index
    %5 = vector.load %arg3[%c0_3, %c0_4, %c0_5] : memref<1x128x128xbf16, #tpu.memory_space<vmem>>, vector<1x128x128xbf16>
    %6 = vector.shape_cast %5 : vector<1x128x128xbf16> to vector<128x128xbf16>
    %cst = arith.constant dense<0.000000e+00> : vector<128x128xf32>
    %7 = tpu.matmul %4, %6, %cst {dimension_numbers = #tpu.dot_dimension_numbers<[1], [0], [0], [1], [0, 0, 1, 1], [], []>} : vector<128x128xbf16>, vector<128x128xbf16>, vector<128x128xf32> -> vector<128x128xf32>
    %c0_6 = arith.constant 0 : index
    %c0_7 = arith.constant 0 : index
    %8 = vector.load %arg9[%c0_6, %c0_7] : memref<1x128xf32, #tpu.memory_space<vmem>>, vector<1x128xf32>
    %cst_8 = arith.constant dense<0xFF800000> : vector<128xf32>
    %9 = vector.multi_reduction <maximumf>, %7, %cst_8 [0] : vector<128x128xf32> to vector<128xf32>
    %10 = vector.shape_cast %9 : vector<128xf32> to vector<1x128xf32>
    %11 = arith.maximumf %8, %10 : vector<1x128xf32>
    %12 = arith.subf %8, %11 : vector<1x128xf32>
    %13 = math.exp %12 : vector<1x128xf32>
    %14 = vector.broadcast %11 : vector<1x128xf32> to vector<128x128xf32>
    %15 = arith.subf %7, %14 : vector<128x128xf32>
    %16 = math.exp %15 : vector<128x128xf32>
    %c0_9 = arith.constant 0 : index
    %c0_10 = arith.constant 0 : index
    %17 = vector.load %arg10[%c0_9, %c0_10] : memref<33x128xf32, #tpu.memory_space<vmem>>, vector<33x128xf32>
    %18 = vector.broadcast %13 : vector<1x128xf32> to vector<33x128xf32>
    %19 = arith.mulf %18, %17 : vector<33x128xf32>
    %c0_11 = arith.constant 0 : index
    %c0_12 = arith.constant 0 : index
    %c0_13 = arith.constant 0 : index
    %20 = vector.load %arg5[%c0_11, %c0_12, %c0_13] : memref<1x33x128xbf16, #tpu.memory_space<vmem>>, vector<1x33x128xbf16>
    %21 = vector.shape_cast %20 : vector<1x33x128xbf16> to vector<33x128xbf16>
    %22 = arith.truncf %16 : vector<128x128xf32> to vector<128x128xbf16>
    %cst_14 = arith.constant dense<0.000000e+00> : vector<33x128xf32>
    %23 = tpu.matmul %21, %22, %cst_14 {dimension_numbers = #tpu.dot_dimension_numbers<[1], [0], [0], [1], [0, 0, 1, 1], [], []>} : vector<33x128xbf16>, vector<128x128xbf16>, vector<33x128xf32> -> vector<33x128xf32>
    %24 = arith.addf %19, %23 : vector<33x128xf32>
    %c0_15 = arith.constant 0 : index
    %c0_16 = arith.constant 0 : index
    %25 = vector.load %arg10[%c0_15, %c0_16] : memref<33x128xf32, #tpu.memory_space<vmem>>, vector<33x128xf32>
    tpu.vector_store %arg10[%c0_15, %c0_16], %24 {strides = array<i32>} : memref<33x128xf32, #tpu.memory_space<vmem>>, vector<33x128xf32>,
    %c0_17 = arith.constant 0 : index
    %c0_18 = arith.constant 0 : index
    %26 = vector.load %arg9[%c0_17, %c0_18] : memref<1x128xf32, #tpu.memory_space<vmem>>, vector<1x128xf32>
    tpu.vector_store %arg9[%c0_17, %c0_18], %11 {strides = array<i32>} : memref<1x128xf32, #tpu.memory_space<vmem>>, vector<1x128xf32>,
    %c1_i32 = arith.constant 1 : i32
    %27 = arith.cmpi eq, %arg2, %c1_i32 : i32
    %28 = arith.extui %27 : i1 to i32
    %c0_i32_19 = arith.constant 0 : i32
    %29 = arith.cmpi ne, %28, %c0_i32_19 : i32
    scf.if %29 {
      %c32 = arith.constant 32 : index
      %c0_20 = arith.constant 0 : index
      %30 = vector.load %arg10[%c32, %c0_20] : memref<33x128xf32, #tpu.memory_space<vmem>>, vector<1x128xf32>
      %31 = tpu.reciprocal %30 {approx = true} : vector<1x128xf32> -> vector<1x128xf32>
      %c0_21 = arith.constant 0 : index
      %c0_22 = arith.constant 0 : index
      %32 = vector.load %arg10[%c0_21, %c0_22] : memref<33x128xf32, #tpu.memory_space<vmem>>, vector<32x128xf32>
      %33 = vector.broadcast %31 : vector<1x128xf32> to vector<32x128xf32>
      %34 = arith.mulf %32, %33 : vector<32x128xf32>
      %c0_23 = arith.constant 0 : index
      %c0_24 = arith.constant 0 : index
      %35 = memref.load %arg7[%c0_23, %c0_24] : memref<1x1xf32, #tpu.memory_space<smem>>
      %36 = vector.broadcast %35 : f32 to vector<32x128xf32>
      %37 = arith.mulf %36, %34 : vector<32x128xf32>
      %c0_25 = arith.constant 0 : index
      %c0_26 = arith.constant 0 : index
      %c0_27 = arith.constant 0 : index
      %38 = vector.load %arg6[%c0_25, %c0_26, %c0_27] : memref<1x32x128xbf16, #tpu.memory_space<vmem>>, vector<1x32x128xbf16>
      %39 = vector.shape_cast %38 : vector<1x32x128xbf16> to vector<32x128xbf16>
      %40 = arith.extf %39 : vector<32x128xbf16> to vector<32x128xf32>
      %41 = arith.addf %37, %40 : vector<32x128xf32>
      %c0_28 = arith.constant 0 : index
      %c0_29 = arith.constant 0 : index
      %c0_30 = arith.constant 0 : index
      %42 = vector.load %arg8[%c0_28, %c0_29, %c0_30] : memref<1x32x128xf32, #tpu.memory_space<vmem>>, vector<1x32x128xf32>
      %43 = vector.shape_cast %42 : vector<1x32x128xf32> to vector<32x128xf32>
      %44 = vector.shape_cast %41 : vector<32x128xf32> to vector<1x32x128xf32>
      tpu.vector_store %arg8[%c0_28, %c0_29, %c0_30], %44 {strides = array<i32>} : memref<1x32x128xf32, #tpu.memory_space<vmem>>, vector<1x32x128xf32>,
    } else {
    }
    return
  }
  func.func @transform_0(%arg0: i32, %arg1: i32, %arg2: i32) -> (i32, i32, i32) {
    %c0_i32 = arith.constant 0 : i32
    %c0_i32_0 = arith.constant 0 : i32
    return %arg0, %c0_i32, %arg1 : i32, i32, i32
  }
  func.func @transform_1(%arg0: i32, %arg1: i32, %arg2: i32) -> (i32, i32, i32) {
    %c0_i32 = arith.constant 0 : i32
    %c0_i32_0 = arith.constant 0 : i32
    return %arg0, %arg2, %c0_i32 : i32, i32, i32
  }
  func.func @transform_2(%arg0: i32, %arg1: i32, %arg2: i32) -> (i32, i32, i32) {
    %c0_i32 = arith.constant 0 : i32
    %c0_i32_0 = arith.constant 0 : i32
    return %arg0, %c0_i32, %arg2 : i32, i32, i32
  }
  func.func @transform_3(%arg0: i32, %arg1: i32, %arg2: i32) -> (i32, i32, i32) {
    %c0_i32 = arith.constant 0 : i32
    %c0_i32_0 = arith.constant 0 : i32
    return %arg0, %c0_i32, %arg1 : i32, i32, i32
  }
  func.func @transform_4(%arg0: i32, %arg1: i32, %arg2: i32) -> (i32, i32) {
    %c0_i32 = arith.constant 0 : i32
    %c0_i32_0 = arith.constant 0 : i32
    %c0_i32_1 = arith.constant 0 : i32
    return %c0_i32, %c0_i32_0 : i32, i32
  }
  func.func @transform_5(%arg0: i32, %arg1: i32, %arg2: i32) -> (i32, i32, i32) {
    %c0_i32 = arith.constant 0 : i32
    %c0_i32_0 = arith.constant 0 : i32
    return %arg0, %c0_i32, %arg1 : i32, i32, i32
  }
}

</mosaic_0001>

<llo_original>
// kernel: tpu_custom_call.1
$region0: #{tpu_custom_call.1}
  #allocation0 [shape = 'u32[]', space=smem, size = 0x4, offset = 0x4, fixed_abs, tag = 'smem constant byte address 0x4 - core index']
  #allocation1 [shape = 'u32[144,128]{1,0:T(1,128)}', space=vmem, size = 0x12000, scoped, tag = 'internal scratch']
  #allocation2 [shape = 'f32[1,128]{1,0:T(1,128)}', space=vmem, size = 0x200, scoped, tag = 'scratch operand']
  #allocation3 [shape = 'f32[33,128]{1,0:T(8,128)}', space=vmem, size = 0x5000, scoped, tag = 'scratch operand']
  #allocation4 [shape = 'f32[1,1]{1,0:T(1,128)S(6)}', space=smem, size = 0x200, scoped, tag = 'scoped memory for tpu_custom_call.1']
  %s0 = inlined_call_operand.hbm [shape: bf16[2,128,256], index: 0, kind: input, shape index: {}]
  %s1 = inlined_call_operand.hbm [shape: bf16[2,256,128], index: 1, kind: input, shape index: {}]
  %s2 = inlined_call_operand.vmem [shape: bf16[2,33,256], index: 2, kind: input, shape index: {}]
  %s3 = inlined_call_operand.vmem [shape: bf16[2,32,256], index: 3, kind: input, shape index: {}]
  %s4 = inlined_call_operand.<no memory space> [shape: f32[1,1], index: 4, kind: input, shape index: {}]
  %s5 = inlined_call_operand.hbm [shape: f32[2,32,256], index: 5, kind: output, shape index: {}]
  %s6 = sld [smem:[#allocation0]]
  $region151: #{tpu_custom_call.1} parent=0
    _
  %s8 = ssub.s32 1, %s6
  %s9 = scalar_select 0, %s8, %s6
  %10 = sst [smem:[#allocation4]] %s4
  $region1: #{tpu_custom_call.1} parent=0
    #allocation5 [shape = 'u8[65536]{0}', space=vmem, size = 0x10000, scoped, tag = 'input window, operand 0']
    #allocation6 [shape = 's32[2]{0}', space=sflag, size = 0x8, scoped, tag = 'scoped memory for tpu_custom_call.1']
    #allocation7 [shape = 's32[2]{0}', space=sflag, size = 0x8, scoped, tag = 'scoped memory for tpu_custom_call.1']
    #allocation8 [shape = 'u8[65536]{0}', space=vmem, size = 0x10000, scoped, tag = 'input window, operand 1']
    #allocation9 [shape = 's32[2]{0}', space=sflag, size = 0x8, scoped, tag = 'scoped memory for tpu_custom_call.1']
    #allocation10 [shape = 'u8[20480]{0}', space=vmem, size = 0x5000, scoped, tag = 'input window, operand 2']
    #allocation11 [shape = 'u8[16384]{0}', space=vmem, size = 0x4000, scoped, tag = 'input window, operand 3']
    #allocation12 [shape = 'u8[32768]{0}', space=vmem, size = 0x8000, scoped, tag = 'output window, operand 0']
    %11 = vsyncpa [#allocation6], 0
    %s12 = scalar_lea.sflag [#allocation6], 1
    %13 = vsyncpa %s12, 0
    %14 = vsyncpa [#allocation9], 0
    %s15 = scalar_lea.sflag [#allocation9], 1
    %16 = vsyncpa %s15, 0
    %17 = vsyncpa [#allocation7], 0
    %s18 = scalar_lea.sflag [#allocation7], 1
    %19 = vsyncpa %s18, 0
    loop: start=0, step=1, limit=10
    $region2: #{tpu_custom_call.1} parent=1 // loop_pre_header
      _
    $region3: #{tpu_custom_call.1} parent=1 // loop_header
      %s21 = sphi 0, %s25
      %p22 = scmp.ge.s32.totalorder %s21, 10
      %s28 = sphi 0, %s47
      %s29 = sphi 0, %s43
      %s30 = sphi 0, %s39
      %s31 = sphi 0, %s28
      %s32 = sphi 0, %s29
      %s33 = sphi 0, %s30
      %s34 = sphi 0, %s31
      %s35 = sphi 0, %s32
      %s36 = sphi 0, %s33
      %s52 = sphi 0, %s54
      %s55 = sphi 0, %s52
      %s56 = sphi 0, %s55
      %s72 = sphi 0, %s56
      %s80 = sphi 0, %s82
      %s83 = sphi 0, %s80
      %s84 = sphi 0, %s83
      %s100 = sphi 0, %s84
      %s108 = sphi 0, %s110
      %s111 = sphi 0, %s108
      %s112 = sphi 0, %s111
      %s128 = sphi 0, %s112
      %s136 = sphi 0, %s138
      %s139 = sphi 0, %s136
      %s140 = sphi 0, %s139
      %s156 = sphi 0, %s140
      %s160 = sphi 0, %s160
      %s162 = sphi 0, %s160
      %s163 = sphi 0, %s162
      %s177 = sphi 0, %s163
      %s185 = sphi 0, %s187
      %s188 = sphi 0, %s185
      %s189 = sphi 0, %s188
      %s205 = sphi 0, %s189
    $region4: #{tpu_custom_call.1} parent=1 // loop_header_branch
      %24 = sbr.rel (%p22) target = $region8
    $region5: #{tpu_custom_call.1} parent=1 // loop_body
      %s26 = ssub.s32 %s21, 1
      %s27 = ssub.s32 %s21, 2
      %s37 = sadd.s32 1, %s30
      %p38 = scmp.ge.s32.totalorder %s37, 2
      %s39 = scalar_select %p38, 0, %s37
      %s40 = sadd.s32 1, %s29
      %s41 = scalar_select %p38, %s40, %s29
      %p42 = scmp.ge.s32.totalorder %s41, 2
      %s43 = scalar_select %p42, 0, %s41
      %s44 = sadd.s32 1, %s28
      %s45 = scalar_select %p42, %s44, %s28
      %p46 = scmp.ge.s32.totalorder %s45, 2
      %s47 = scalar_select %p46, 0, %s45
      %s48 = ssub.s32 %s28, %s47
      %s49 = ssub.s32 %s29, %s43
      %s50 = sor.u32 %s48, %s49
      %p51 = scmp.eq.s32.totalorder %s50, 0
      %s53 = sadd.s32 %s52, 1
      %s54 = scalar_select %p51, %s52, %s53
      %p57 = pneg %p51
      %p58 = scmp.eq.s32.totalorder %s21, 7
      %p59 = por %p57, %p58
      %p60 = scmp.ne.s32.totalorder %s52, %s55
      %p61 = scmp.eq.s32.totalorder %s21, 0
      %p62 = por %p60, %p61
      %p63 = scmp.ne.s32.totalorder %s52, %s55
      %p64 = scmp.eq.s32.totalorder %s26, 7
      %p65 = por %p63, %p64
      %p66 = scmp.ne.s32.totalorder %s55, %s56
      %p67 = scmp.eq.s32.totalorder %s26, 0
      %p68 = por %p66, %p67
      %p69 = scmp.ne.s32.totalorder %s55, %s56
      %p70 = scmp.eq.s32.totalorder %s27, 7
      %p71 = por %p69, %p70
      %p73 = scmp.ne.s32.totalorder %s56, %s72
      %p74 = scmp.eq.s32.totalorder %s27, 0
      %p75 = por %p73, %p74
      %s76 = ssub.s32 %s28, %s47
      %s77 = ssub.s32 %s30, %s39
      %s78 = sor.u32 %s76, %s77
      %p79 = scmp.eq.s32.totalorder %s78, 0
      %s81 = sadd.s32 %s80, 1
      %s82 = scalar_select %p79, %s80, %s81
      %p85 = pneg %p79
      %p86 = scmp.eq.s32.totalorder %s21, 7
      %p87 = por %p85, %p86
      %p88 = scmp.ne.s32.totalorder %s80, %s83
      %p89 = scmp.eq.s32.totalorder %s21, 0
      %p90 = por %p88, %p89
      %p91 = scmp.ne.s32.totalorder %s80, %s83
      %p92 = scmp.eq.s32.totalorder %s26, 7
      %p93 = por %p91, %p92
      %p94 = scmp.ne.s32.totalorder %s83, %s84
      %p95 = scmp.eq.s32.totalorder %s26, 0
      %p96 = por %p94, %p95
      %p97 = scmp.ne.s32.totalorder %s83, %s84
      %p98 = scmp.eq.s32.totalorder %s27, 7
      %p99 = por %p97, %p98
      %p101 = scmp.ne.s32.totalorder %s84, %s100
      %p102 = scmp.eq.s32.totalorder %s27, 0
      %p103 = por %p101, %p102
      %s104 = ssub.s32 %s28, %s47
      %s105 = ssub.s32 %s30, %s39
      %s106 = sor.u32 %s104, %s105
      %p107 = scmp.eq.s32.totalorder %s106, 0
      %s109 = sadd.s32 %s108, 1
      %s110 = scalar_select %p107, %s108, %s109
      %p113 = pneg %p107
      %p114 = scmp.eq.s32.totalorder %s21, 7
      %p115 = por %p113, %p114
      %p116 = scmp.ne.s32.totalorder %s108, %s111
      %p117 = scmp.eq.s32.totalorder %s21, 0
      %p118 = por %p116, %p117
      %p119 = scmp.ne.s32.totalorder %s108, %s111
      %p120 = scmp.eq.s32.totalorder %s26, 7
      %p121 = por %p119, %p120
      %p122 = scmp.ne.s32.totalorder %s111, %s112
      %p123 = scmp.eq.s32.totalorder %s26, 0
      %p124 = por %p122, %p123
      %p125 = scmp.ne.s32.totalorder %s111, %s112
      %p126 = scmp.eq.s32.totalorder %s27, 7
      %p127 = por %p125, %p126
      %p129 = scmp.ne.s32.totalorder %s112, %s128
      %p130 = scmp.eq.s32.totalorder %s27, 0
      %p131 = por %p129, %p130
      %s132 = ssub.s32 %s28, %s47
      %s133 = ssub.s32 %s29, %s43
      %s134 = sor.u32 %s132, %s133
      %p135 = scmp.eq.s32.totalorder %s134, 0
      %s137 = sadd.s32 %s136, 1
      %s138 = scalar_select %p135, %s136, %s137
      %p141 = pneg %p135
      %p142 = scmp.eq.s32.totalorder %s21, 7
      %p143 = por %p141, %p142
      %p144 = scmp.ne.s32.totalorder %s136, %s139
      %p145 = scmp.eq.s32.totalorder %s21, 0
      %p146 = por %p144, %p145
      %p147 = scmp.ne.s32.totalorder %s136, %s139
      %p148 = scmp.eq.s32.totalorder %s26, 7
      %p149 = por %p147, %p148
      %p150 = scmp.ne.s32.totalorder %s139, %s140
      %p151 = scmp.eq.s32.totalorder %s26, 0
      %p152 = por %p150, %p151
      %p153 = scmp.ne.s32.totalorder %s139, %s140
      %p154 = scmp.eq.s32.totalorder %s27, 7
      %p155 = por %p153, %p154
      %p157 = scmp.ne.s32.totalorder %s140, %s156
      %p158 = scmp.eq.s32.totalorder %s27, 0
      %p159 = por %p157, %p158
      %s161 = sadd.s32 %s160, 1
      %p164 = scmp.eq.s32.totalorder %s21, 7
      %p165 = scmp.ne.s32.totalorder %s160, %s162
      %p166 = scmp.eq.s32.totalorder %s21, 0
      %p167 = por %p165, %p166
      %p168 = scmp.ne.s32.totalorder %s160, %s162
      %p169 = scmp.eq.s32.totalorder %s26, 7
      %p170 = por %p168, %p169
      %p171 = scmp.ne.s32.totalorder %s162, %s163
      %p172 = scmp.eq.s32.totalorder %s26, 0
      %p173 = por %p171, %p172
      %p174 = scmp.ne.s32.totalorder %s162, %s163
      %p175 = scmp.eq.s32.totalorder %s27, 7
      %p176 = por %p174, %p175
      %p178 = scmp.ne.s32.totalorder %s163, %s177
      %p179 = scmp.eq.s32.totalorder %s27, 0
      %p180 = por %p178, %p179
      %s181 = ssub.s32 %s28, %s47
      %s182 = ssub.s32 %s29, %s43
      %s183 = sor.u32 %s181, %s182
      %p184 = scmp.eq.s32.totalorder %s183, 0
      %s186 = sadd.s32 %s185, 1
      %s187 = scalar_select %p184, %s185, %s186
      %p190 = pneg %p184
      %p191 = scmp.eq.s32.totalorder %s21, 7
      %p192 = por %p190, %p191
      %p193 = scmp.ne.s32.totalorder %s185, %s188
      %p194 = scmp.eq.s32.totalorder %s21, 0
      %p195 = por %p193, %p194
      %p196 = scmp.ne.s32.totalorder %s185, %s188
      %p197 = scmp.eq.s32.totalorder %s26, 7
      %p198 = por %p196, %p197
      %p199 = scmp.ne.s32.totalorder %s188, %s189
      %p200 = scmp.eq.s32.totalorder %s26, 0
      %p201 = por %p199, %p200
      %p202 = scmp.ne.s32.totalorder %s188, %s189
      %p203 = scmp.eq.s32.totalorder %s27, 7
      %p204 = por %p202, %p203
      %p206 = scmp.ne.s32.totalorder %s189, %s205
      %p207 = scmp.eq.s32.totalorder %s27, 0
      %p208 = por %p206, %p207
      %p209 = scmp.le.s32.totalorder 1, %s21
      %p210 = scmp.lt.s32.totalorder %s21, 9
      %p211 = pnand %p209, %p210
      %p212 = pneg %p211
      // Predicated region
      $region9: #{tpu_custom_call.1} parent=5 // pred_check
        _
      $region10: #{tpu_custom_call.1} parent=5 // pred_check_branch
        %214 = sbr.rel (%p211) target = $region12
      $region11: #{tpu_custom_call.1} parent=5 // pred_region
        %s215 = ssub.s32 %s21, 1
        // Predicated region
        $region13: #{tpu_custom_call.1} parent=11 // pred_check
          %p216 = pneg %p173
        $region14: #{tpu_custom_call.1} parent=11 // pred_check_branch
          %218 = sbr.rel (%p216) target = $region16
        $region15: #{tpu_custom_call.1} parent=11 // pred_region
          _
        $region16: #{tpu_custom_call.1} parent=11 // pred_fallthru
          _
      $region12: #{tpu_custom_call.1} parent=5 // pred_fallthru
        _
      %p219 = scmp.lt.s32.totalorder %s21, 8
      // Predicated region
      $region17: #{tpu_custom_call.1} parent=5 // pred_check
        %p220 = pneg %p219
      $region18: #{tpu_custom_call.1} parent=5 // pred_check_branch
        %222 = sbr.rel (%p220) target = $region20
      $region19: #{tpu_custom_call.1} parent=5 // pred_region
        // Predicated region
        $region21: #{tpu_custom_call.1} parent=19 // pred_check
          %p223 = pneg %p62
        $region22: #{tpu_custom_call.1} parent=19 // pred_check_branch
          %225 = sbr.rel (%p223) target = $region24
        $region23: #{tpu_custom_call.1} parent=19 // pred_region
          %s226 = sand.u32 %s52, 1
          %s227 = scalar_lea.sflag [#allocation6], %s226
          %s228 = sand.u32 %s52, 1
          %s229 = smul.addr %s228, 64
          %s230 = scalar_lea.vmem [#allocation5], %s229
          %s232 = ssub.s32 1024, 1024
          %233 = vsyncadd %s227, %s232
          %s234 = smul.addr %s28, 32
          %s235 = sadd.s32 %s29, %s234
          %s236 = smul.addr %s235, 64
          %s237 = scalar_lea.hbm %s0, %s236
          %s238 = sshll.u32 %s230, 4
          %s239 = int_to_ptr.vmem [resolvable:$true] %s238
          %244 = dma.hbm_to_vmem [thread:$0]  %s237, 1024, %s239, %s227, 128, 64, 4
        $region24: #{tpu_custom_call.1} parent=19 // pred_fallthru
          _
        // Predicated region
        $region25: #{tpu_custom_call.1} parent=19 // pred_check
          %p245 = pneg %p90
        $region26: #{tpu_custom_call.1} parent=19 // pred_check_branch
          %247 = sbr.rel (%p245) target = $region28
        $region27: #{tpu_custom_call.1} parent=19 // pred_region
          %s248 = sand.u32 %s80, 1
          %s249 = scalar_lea.sflag [#allocation9], %s248
          %s250 = sand.u32 %s80, 1
          %s251 = smul.addr %s250, 64
          %s252 = scalar_lea.vmem [#allocation8], %s251
          %s253 = smul.u32 16, %s30
          %s255 = ssub.s32 1024, 1024
          %256 = vsyncadd %s249, %s255
          %s257 = smul.addr %s28, 32
          %s258 = sadd.s32 %s253, %s257
          %s259 = smul.addr %s258, 64
          %s260 = scalar_lea.hbm %s1, %s259
          %s261 = sshll.u32 %s252, 4
          %s262 = int_to_ptr.vmem [resolvable:$true] %s261
          %267 = dma.hbm_to_vmem [thread:$0]  %s260, 1024, %s262, %s249, 64, 64, 4
        $region28: #{tpu_custom_call.1} parent=19 // pred_fallthru
          _
        // Predicated region
        $region29: #{tpu_custom_call.1} parent=19 // pred_check
          %p268 = pneg %p118
        $region30: #{tpu_custom_call.1} parent=19 // pred_check_branch
          %270 = sbr.rel (%p268) target = $region32
        $region31: #{tpu_custom_call.1} parent=19 // pred_region
          %s271 = sand.u32 %s108, 1
          %s272 = sand.u32 %s108, 1
          %s273 = smul.addr %s272, 20
          %s274 = scalar_lea.vmem [#allocation10], %s273
          %s275 = smul.addr %s28, 10
          %s276 = sadd.s32 %s30, %s275
          %s277 = smul.addr %s276, 4
          %s278 = scalar_lea.vmem %s2, %s277
          // Predicated region
          $region33: #{tpu_custom_call.1} parent=31 // pred_check
            _
          $region34: #{tpu_custom_call.1} parent=31 // pred_check_branch
            %280 = sbr.rel (0) target = $region36
          $region35: #{tpu_custom_call.1} parent=31 // pred_region
            // Predicated region
            $region37: #{tpu_custom_call.1} parent=35 // pred_check
              _
            $region38: #{tpu_custom_call.1} parent=35 // pred_check_branch
              %282 = sbr.rel target = $region40
            $region39: #{tpu_custom_call.1} parent=35 // pred_region
              // Predicated region
              $region52: #{tpu_custom_call.1} parent=39 // pred_check
                _
              $region53: #{tpu_custom_call.1} parent=39 // pred_check_branch
                %305 = sbr.rel (0) target = $region55
              $region54: #{tpu_custom_call.1} parent=39 // pred_region
                loop: start=0, step=1, limit=1
                $region56: #{tpu_custom_call.1} parent=54 // loop_pre_header
                  _
                $region57: #{tpu_custom_call.1} parent=54 // loop_header
                  %s307 = sphi 0, %s311
                  %p308 = scmp.ge.s32.totalorder %s307, 1
                  %s312 = sphi %s278, %s278
                  %s313 = sphi %s274, %s274
                $region58: #{tpu_custom_call.1} parent=54 // loop_header_branch
                  %310 = sbr.rel (%p308) target = $region62
                $region59: #{tpu_custom_call.1} parent=54 // loop_body
                  _
                $region60: #{tpu_custom_call.1} parent=54 // loop_footer
                  %s311 = sadd.s32 1, %s307
                $region61: #{tpu_custom_call.1} parent=54 // loop_footer_branch
                  %306 = sbr.rel target = $region57
                $region62: #{tpu_custom_call.1} parent=54 // loop_exit
                  _
                loop: start=0, step=1, limit=1
                $region63: #{tpu_custom_call.1} parent=54 // loop_pre_header
                  _
                $region64: #{tpu_custom_call.1} parent=54 // loop_header
                  %s316 = sphi 0, %s320
                  %p317 = scmp.ge.s32.totalorder %s316, 1
                  %s321 = sphi %s278, %s278
                  %s322 = sphi %s274, %s274
                $region65: #{tpu_custom_call.1} parent=54 // loop_header_branch
                  %319 = sbr.rel (%p317) target = $region69
                $region66: #{tpu_custom_call.1} parent=54 // loop_body
                  %v323 = vld [vmem:[%s321] sm:$0xf]
                  %324 = vst [vmem:[%s322] sm:$0xf] %v323
                  %v325 = vld [vmem:[%s321 + $0x8] sm:$0xf]
                  %326 = vst [vmem:[%s322 + $0x4] sm:$0xf] %v325
                  %v327 = vld [vmem:[%s321 + $0x10] sm:$0xf]
                  %328 = vst [vmem:[%s322 + $0x8] sm:$0xf] %v327
                  %v329 = vld [vmem:[%s321 + $0x18] sm:$0xf]
                  %330 = vst [vmem:[%s322 + $0xc] sm:$0xf] %v329
                  %v331 = vld [vmem:[%s321 + $0x20] sm:$0xf]
                  %332 = vst [vmem:[%s322 + $0x10] sm:$0xf] %v331
                $region67: #{tpu_custom_call.1} parent=54 // loop_footer
                  %s320 = sadd.s32 1, %s316
                $region68: #{tpu_custom_call.1} parent=54 // loop_footer_branch
                  %315 = sbr.rel target = $region64
                $region69: #{tpu_custom_call.1} parent=54 // loop_exit
                  _
              $region55: #{tpu_custom_call.1} parent=39 // pred_fallthru
                _
            $region40: #{tpu_custom_call.1} parent=35 // pred_fallthru
              _
            // Predicated region
            $region41: #{tpu_custom_call.1} parent=35 // pred_check
              _
            $region42: #{tpu_custom_call.1} parent=35 // pred_check_branch
              %284 = sbr.rel (0) target = $region44
            $region43: #{tpu_custom_call.1} parent=35 // pred_region
              loop: start=0, step=1, limit=1
              $region45: #{tpu_custom_call.1} parent=43 // loop_pre_header
                _
              $region46: #{tpu_custom_call.1} parent=43 // loop_header
                %s287 = sphi 0, %s291
                %p288 = scmp.ge.s32.totalorder %s287, 1
                %s292 = sphi %s278, %s278
                %s293 = sphi %s274, %s274
              $region47: #{tpu_custom_call.1} parent=43 // loop_header_branch
                %290 = sbr.rel (%p288) target = $region51
              $region48: #{tpu_custom_call.1} parent=43 // loop_body
                %v294 = vld [vmem:[%s292] sm:$0xf]
                %295 = vst [vmem:[%s293] sm:$0xf] %v294
                %v296 = vld [vmem:[%s292 + $0x8] sm:$0xf]
                %297 = vst [vmem:[%s293 + $0x4] sm:$0xf] %v296
                %v298 = vld [vmem:[%s292 + $0x10] sm:$0xf]
                %299 = vst [vmem:[%s293 + $0x8] sm:$0xf] %v298
                %v300 = vld [vmem:[%s292 + $0x18] sm:$0xf]
                %301 = vst [vmem:[%s293 + $0xc] sm:$0xf] %v300
                %v302 = vld [vmem:[%s292 + $0x20] sm:$0xf]
                %303 = vst [vmem:[%s293 + $0x10] sm:$0xf] %v302
              $region49: #{tpu_custom_call.1} parent=43 // loop_footer
                %s291 = sadd.s32 1, %s287
              $region50: #{tpu_custom_call.1} parent=43 // loop_footer_branch
                %286 = sbr.rel target = $region46
              $region51: #{tpu_custom_call.1} parent=43 // loop_exit
                _
            $region44: #{tpu_custom_call.1} parent=35 // pred_fallthru
              _
          $region36: #{tpu_custom_call.1} parent=31 // pred_fallthru
            _
          %333 = vnop
        $region32: #{tpu_custom_call.1} parent=19 // pred_fallthru
          _
        // Predicated region
        $region70: #{tpu_custom_call.1} parent=19 // pred_check
          %p334 = pneg %p146
        $region71: #{tpu_custom_call.1} parent=19 // pred_check_branch
          %336 = sbr.rel (%p334) target = $region73
        $region72: #{tpu_custom_call.1} parent=19 // pred_region
          %s337 = sand.u32 %s136, 1
          %s338 = sand.u32 %s136, 1
          %s339 = smul.addr %s338, 16
          %s340 = scalar_lea.vmem [#allocation11], %s339
          %s341 = smul.addr %s28, 8
          %s342 = sadd.s32 %s29, %s341
          %s343 = smul.addr %s342, 4
          %s344 = scalar_lea.vmem %s3, %s343
          // Predicated region
          $region74: #{tpu_custom_call.1} parent=72 // pred_check
            _
          $region75: #{tpu_custom_call.1} parent=72 // pred_check_branch
            %346 = sbr.rel (0) target = $region77
          $region76: #{tpu_custom_call.1} parent=72 // pred_region
            // Predicated region
            $region78: #{tpu_custom_call.1} parent=76 // pred_check
              _
            $region79: #{tpu_custom_call.1} parent=76 // pred_check_branch
              %348 = sbr.rel target = $region81
            $region80: #{tpu_custom_call.1} parent=76 // pred_region
              // Predicated region
              $region93: #{tpu_custom_call.1} parent=80 // pred_check
                _
              $region94: #{tpu_custom_call.1} parent=80 // pred_check_branch
                %369 = sbr.rel (0) target = $region96
              $region95: #{tpu_custom_call.1} parent=80 // pred_region
                loop: start=0, step=1, limit=1
                $region97: #{tpu_custom_call.1} parent=95 // loop_pre_header
                  _
                $region98: #{tpu_custom_call.1} parent=95 // loop_header
                  %s371 = sphi 0, %s375
                  %p372 = scmp.ge.s32.totalorder %s371, 1
                  %s376 = sphi %s344, %s344
                  %s377 = sphi %s340, %s340
                $region99: #{tpu_custom_call.1} parent=95 // loop_header_branch
                  %374 = sbr.rel (%p372) target = $region103
                $region100: #{tpu_custom_call.1} parent=95 // loop_body
                  _
                $region101: #{tpu_custom_call.1} parent=95 // loop_footer
                  %s375 = sadd.s32 1, %s371
                $region102: #{tpu_custom_call.1} parent=95 // loop_footer_branch
                  %370 = sbr.rel target = $region98
                $region103: #{tpu_custom_call.1} parent=95 // loop_exit
                  _
                loop: start=0, step=1, limit=1
                $region104: #{tpu_custom_call.1} parent=95 // loop_pre_header
                  _
                $region105: #{tpu_custom_call.1} parent=95 // loop_header
                  %s380 = sphi 0, %s384
                  %p381 = scmp.ge.s32.totalorder %s380, 1
                  %s385 = sphi %s344, %s344
                  %s386 = sphi %s340, %s340
                $region106: #{tpu_custom_call.1} parent=95 // loop_header_branch
                  %383 = sbr.rel (%p381) target = $region110
                $region107: #{tpu_custom_call.1} parent=95 // loop_body
                  %v387 = vld [vmem:[%s385] sm:$0xf]
                  %388 = vst [vmem:[%s386] sm:$0xf] %v387
                  %v389 = vld [vmem:[%s385 + $0x8] sm:$0xf]
                  %390 = vst [vmem:[%s386 + $0x4] sm:$0xf] %v389
                  %v391 = vld [vmem:[%s385 + $0x10] sm:$0xf]
                  %392 = vst [vmem:[%s386 + $0x8] sm:$0xf] %v391
                  %v393 = vld [vmem:[%s385 + $0x18] sm:$0xf]
                  %394 = vst [vmem:[%s386 + $0xc] sm:$0xf] %v393
                $region108: #{tpu_custom_call.1} parent=95 // loop_footer
                  %s384 = sadd.s32 1, %s380
                $region109: #{tpu_custom_call.1} parent=95 // loop_footer_branch
                  %379 = sbr.rel target = $region105
                $region110: #{tpu_custom_call.1} parent=95 // loop_exit
                  _
              $region96: #{tpu_custom_call.1} parent=80 // pred_fallthru
                _
            $region81: #{tpu_custom_call.1} parent=76 // pred_fallthru
              _
            // Predicated region
            $region82: #{tpu_custom_call.1} parent=76 // pred_check
              _
            $region83: #{tpu_custom_call.1} parent=76 // pred_check_branch
              %350 = sbr.rel (0) target = $region85
            $region84: #{tpu_custom_call.1} parent=76 // pred_region
              loop: start=0, step=1, limit=1
              $region86: #{tpu_custom_call.1} parent=84 // loop_pre_header
                _
              $region87: #{tpu_custom_call.1} parent=84 // loop_header
                %s353 = sphi 0, %s357
                %p354 = scmp.ge.s32.totalorder %s353, 1
                %s358 = sphi %s344, %s344
                %s359 = sphi %s340, %s340
              $region88: #{tpu_custom_call.1} parent=84 // loop_header_branch
                %356 = sbr.rel (%p354) target = $region92
              $region89: #{tpu_custom_call.1} parent=84 // loop_body
                %v360 = vld [vmem:[%s358] sm:$0xf]
                %361 = vst [vmem:[%s359] sm:$0xf] %v360
                %v362 = vld [vmem:[%s358 + $0x8] sm:$0xf]
                %363 = vst [vmem:[%s359 + $0x4] sm:$0xf] %v362
                %v364 = vld [vmem:[%s358 + $0x10] sm:$0xf]
                %365 = vst [vmem:[%s359 + $0x8] sm:$0xf] %v364
                %v366 = vld [vmem:[%s358 + $0x18] sm:$0xf]
                %367 = vst [vmem:[%s359 + $0xc] sm:$0xf] %v366
              $region90: #{tpu_custom_call.1} parent=84 // loop_footer
                %s357 = sadd.s32 1, %s353
              $region91: #{tpu_custom_call.1} parent=84 // loop_footer_branch
                %352 = sbr.rel target = $region87
              $region92: #{tpu_custom_call.1} parent=84 // loop_exit
                _
            $region85: #{tpu_custom_call.1} parent=76 // pred_fallthru
              _
          $region77: #{tpu_custom_call.1} parent=72 // pred_fallthru
            _
          %395 = vnop
        $region73: #{tpu_custom_call.1} parent=19 // pred_fallthru
          _
      $region20: #{tpu_custom_call.1} parent=5 // pred_fallthru
        _
      %p396 = scmp.le.s32.totalorder 1, %s21
      %p397 = scmp.lt.s32.totalorder %s21, 9
      %p398 = pnand %p396, %p397
      %p399 = pneg %p398
      // Predicated region
      $region111: #{tpu_custom_call.1} parent=5 // pred_check
        _
      $region112: #{tpu_custom_call.1} parent=5 // pred_check_branch
        %401 = sbr.rel (%p398) target = $region114
      $region113: #{tpu_custom_call.1} parent=5 // pred_region
        %s402 = ssub.s32 %s21, 1
        %s403 = sand.u32 %s55, 1
        %s404 = scalar_lea.sflag [#allocation6], %s403
        %s405 = sand.u32 %s55, 1
        %s406 = smul.addr %s405, 64
        %s407 = scalar_lea.vmem [#allocation5], %s406
        // Predicated region
        $region115: #{tpu_custom_call.1} parent=113 // pred_check
          %p408 = pneg %p68
        $region116: #{tpu_custom_call.1} parent=113 // pred_check_branch
          %410 = sbr.rel (%p408) target = $region118
        $region117: #{tpu_custom_call.1} parent=113 // pred_region
          %411 = dma.done %s404, 1024
        $region118: #{tpu_custom_call.1} parent=113 // pred_fallthru
          _
        %s412 = sand.u32 %s83, 1
        %s413 = scalar_lea.sflag [#allocation9], %s412
        %s414 = sand.u32 %s83, 1
        %s415 = smul.addr %s414, 64
        %s416 = scalar_lea.vmem [#allocation8], %s415
        // Predicated region
        $region119: #{tpu_custom_call.1} parent=113 // pred_check
          %p417 = pneg %p96
        $region120: #{tpu_custom_call.1} parent=113 // pred_check_branch
          %419 = sbr.rel (%p417) target = $region122
        $region121: #{tpu_custom_call.1} parent=113 // pred_region
          %420 = dma.done %s413, 1024
        $region122: #{tpu_custom_call.1} parent=113 // pred_fallthru
          _
        %s421 = sand.u32 %s111, 1
        %s422 = sand.u32 %s111, 1
        %s423 = smul.addr %s422, 20
        %s424 = scalar_lea.vmem [#allocation10], %s423
        // Predicated region
        $region123: #{tpu_custom_call.1} parent=113 // pred_check
          %p425 = pneg %p124
        $region124: #{tpu_custom_call.1} parent=113 // pred_check_branch
          %427 = sbr.rel (%p425) target = $region126
        $region125: #{tpu_custom_call.1} parent=113 // pred_region
          _
        $region126: #{tpu_custom_call.1} parent=113 // pred_fallthru
          _
        %s428 = sand.u32 %s139, 1
        %s429 = sand.u32 %s139, 1
        %s430 = smul.addr %s429, 16
        %s431 = scalar_lea.vmem [#allocation11], %s430
        // Predicated region
        $region127: #{tpu_custom_call.1} parent=113 // pred_check
          %p432 = pneg %p152
        $region128: #{tpu_custom_call.1} parent=113 // pred_check_branch
          %434 = sbr.rel (%p432) target = $region130
        $region129: #{tpu_custom_call.1} parent=113 // pred_region
          _
        $region130: #{tpu_custom_call.1} parent=113 // pred_fallthru
          _
        %s435 = sand.u32 %s55, 1
        %s436 = scalar_lea.sflag [#allocation6], %s435
        %s437 = sand.u32 %s55, 1
        %s438 = smul.addr %s437, 64
        %s439 = scalar_lea.vmem [#allocation5], %s438
        %p440 = pneg %p68
        %p441 = pneg %p65
        %s442 = sand.u32 %s83, 1
        %s443 = scalar_lea.sflag [#allocation9], %s442
        %s444 = sand.u32 %s83, 1
        %s445 = smul.addr %s444, 64
        %s446 = scalar_lea.vmem [#allocation8], %s445
        %p447 = pneg %p96
        %p448 = pneg %p93
        %s449 = sand.u32 %s111, 1
        %s450 = sand.u32 %s111, 1
        %s451 = smul.addr %s450, 20
        %s452 = scalar_lea.vmem [#allocation10], %s451
        %p453 = pneg %p124
        %p454 = pneg %p121
        %s455 = sand.u32 %s139, 1
        %s456 = sand.u32 %s139, 1
        %s457 = smul.addr %s456, 16
        %s458 = scalar_lea.vmem [#allocation11], %s457
        %p459 = pneg %p152
        %p460 = pneg %p149
        %p461 = pneg %p173
        %p462 = pneg %p170
        %p463 = pneg %p201
        %p464 = pneg %p198
        %s465 = sand.u32 %s188, 1
        %s466 = scalar_lea.sflag [#allocation7], %s465
        %s467 = sand.u32 %s188, 1
        %s468 = smul.addr %s467, 32
        %s469 = scalar_lea.vmem [#allocation12], %s468
        %s470 = smul.u32 16, %s33
        %p472 = scmp.eq.s32.totalorder %s33, 0
        // Predicated region
        $region131: #{tpu_custom_call.1} parent=113 // pred_check
          %p473 = pneg %p472
        $region132: #{tpu_custom_call.1} parent=113 // pred_check_branch
          %475 = sbr.rel (%p473) target = $region134
        $region133: #{tpu_custom_call.1} parent=113 // pred_region
          %476 = vst [vmem:[#allocation2] sm:$0x1] -inf
          %477 = vst [vmem:[#allocation3] sm:$0xff] 0.0
          %478 = vst [vmem:[#allocation3 + $0x8] sm:$0xff] 0.0
          %479 = vst [vmem:[#allocation3 + $0x10] sm:$0xff] 0.0
          %480 = vst [vmem:[#allocation3 + $0x18] sm:$0xff] 0.0
          %481 = vst [vmem:[#allocation3 + $0x20] sm:$0x1] 0.0
        $region134: #{tpu_custom_call.1} parent=113 // pred_fallthru
          _
        %v482 = vld [vmem:[%s416] sm:$0xf]
        %v483 = vld [vmem:[%s416 + $0x4] sm:$0xf]
        %v484 = vld [vmem:[%s416 + $0x8] sm:$0xf]
        %v485 = vld [vmem:[%s416 + $0xc] sm:$0xf]
        %v486 = vld [vmem:[%s416 + $0x10] sm:$0xf]
        %v487 = vld [vmem:[%s416 + $0x14] sm:$0xf]
        %v488 = vld [vmem:[%s416 + $0x18] sm:$0xf]
        %v489 = vld [vmem:[%s416 + $0x1c] sm:$0xf]
        %v490 = vld [vmem:[%s416 + $0x20] sm:$0xf]
        %v491 = vld [vmem:[%s416 + $0x24] sm:$0xf]
        %v492 = vld [vmem:[%s416 + $0x28] sm:$0xf]
        %v493 = vld [vmem:[%s416 + $0x2c] sm:$0xf]
        %v494 = vld [vmem:[%s416 + $0x30] sm:$0xf]
        %v495 = vld [vmem:[%s416 + $0x34] sm:$0xf]
        %v496 = vld [vmem:[%s416 + $0x38] sm:$0xf]
        %v497 = vld [vmem:[%s416 + $0x3c] sm:$0xf]
        %v498 = vld [vmem:[%s407] sm:$0xf]
        %v499 = vld [vmem:[%s407 + $0x4] sm:$0xf]
        %v500 = vld [vmem:[%s407 + $0x8] sm:$0xf]
        %v501 = vld [vmem:[%s407 + $0xc] sm:$0xf]
        %v502 = vld [vmem:[%s407 + $0x10] sm:$0xf]
        %v503 = vld [vmem:[%s407 + $0x14] sm:$0xf]
        %v504 = vld [vmem:[%s407 + $0x18] sm:$0xf]
        %v505 = vld [vmem:[%s407 + $0x1c] sm:$0xf]
        %v506 = vld [vmem:[%s407 + $0x20] sm:$0xf]
        %v507 = vld [vmem:[%s407 + $0x24] sm:$0xf]
        %v508 = vld [vmem:[%s407 + $0x28] sm:$0xf]
        %v509 = vld [vmem:[%s407 + $0x2c] sm:$0xf]
        %v510 = vld [vmem:[%s407 + $0x30] sm:$0xf]
        %v511 = vld [vmem:[%s407 + $0x34] sm:$0xf]
        %v512 = vld [vmem:[%s407 + $0x38] sm:$0xf]
        %v513 = vld [vmem:[%s407 + $0x3c] sm:$0xf]
        %v530 = vunpack.c.l.b16 %v482
        %v531 = vunpack.c.l.b16 %v483
        %v532 = vunpack.c.l.b16 %v484
        %v533 = vunpack.c.l.b16 %v485
        %v534 = vunpack.c.l.b16 %v486
        %v535 = vunpack.c.l.b16 %v487
        %v536 = vunpack.c.l.b16 %v488
        %v537 = vunpack.c.l.b16 %v489
        %v538 = vunpack.c.l.b16 %v490
        %v539 = vunpack.c.l.b16 %v491
        %v540 = vunpack.c.l.b16 %v492
        %v541 = vunpack.c.l.b16 %v493
        %v542 = vunpack.c.l.b16 %v494
        %v543 = vunpack.c.l.b16 %v495
        %v544 = vunpack.c.l.b16 %v496
        %v545 = vunpack.c.l.b16 %v497
        %v546 = vpack.c.b16 %v531, %v530
        %v547 = vpack.c.b16 %v533, %v532
        %v548 = vpack.c.b16 %v535, %v534
        %v549 = vpack.c.b16 %v537, %v536
        %v550 = vpack.c.b16 %v539, %v538
        %v551 = vpack.c.b16 %v541, %v540
        %v552 = vpack.c.b16 %v543, %v542
        %v553 = vpack.c.b16 %v545, %v544
        %v578 = vunpack.c.l.b16 %v498
        %v579 = vunpack.c.l.b16 %v499
        %v580 = vunpack.c.l.b16 %v500
        %v581 = vunpack.c.l.b16 %v501
        %v582 = vunpack.c.l.b16 %v502
        %v583 = vunpack.c.l.b16 %v503
        %v584 = vunpack.c.l.b16 %v504
        %v585 = vunpack.c.l.b16 %v505
        %v586 = vunpack.c.l.b16 %v506
        %v587 = vunpack.c.l.b16 %v507
        %v588 = vunpack.c.l.b16 %v508
        %v589 = vunpack.c.l.b16 %v509
        %v590 = vunpack.c.l.b16 %v510
        %v591 = vunpack.c.l.b16 %v511
        %v592 = vunpack.c.l.b16 %v512
        %v593 = vunpack.c.l.b16 %v513
        %v594 = vpack.c.b16 %v579, %v578
        %v595 = vpack.c.b16 %v581, %v580
        %v596 = vpack.c.b16 %v583, %v582
        %v597 = vpack.c.b16 %v585, %v584
        %v598 = vpack.c.b16 %v587, %v586
        %v599 = vpack.c.b16 %v589, %v588
        %v600 = vpack.c.b16 %v591, %v590
        %v601 = vpack.c.b16 %v593, %v592
        %610 = vmatprep.subr.bf16.mxu0 0
        %611 = vmatpush1.bf16.msra.mxu0 %v594
        %612 = vmatprep.subr.bf16.mxu0 0
        %613 = vmatpush1.bf16.msra.mxu0 %v595
        %614 = vmatprep.subr.bf16.mxu0 0
        %615 = vmatpush1.bf16.msra.mxu0 %v596
        %616 = vmatprep.subr.bf16.mxu0 0
        %617 = vmatpush1.bf16.msra.mxu0 %v597
        %618 = vmatprep.subr.bf16.mxu0 0
        %619 = vmatpush1.bf16.msra.mxu0 %v598
        %620 = vmatprep.subr.bf16.mxu0 0
        %621 = vmatpush1.bf16.msra.mxu0 %v599
        %622 = vmatprep.subr.bf16.mxu0 0
        %623 = vmatpush1.bf16.msra.mxu0 %v600
        %624 = vmatprep.subr.bf16.mxu0 0
        %625 = vmatpush1.bf16.msra.mxu0 %v601
        %626 = vmatprep.subr.bf16.mxu0 0
        %627 = vmatpush1.bf16.msra.mxu0 0
        %628 = vmatprep.subr.bf16.mxu0 0
        %629 = vmatpush1.bf16.msra.mxu0 0
        %630 = vmatprep.subr.bf16.mxu0 0
        %631 = vmatpush1.bf16.msra.mxu0 0
        %632 = vmatprep.subr.bf16.mxu0 0
        %633 = vmatpush1.bf16.msra.mxu0 0
        %634 = vmatprep.subr.bf16.mxu0 0
        %635 = vmatpush1.bf16.msra.mxu0 0
        %636 = vmatprep.subr.bf16.mxu0 0
        %637 = vmatpush1.bf16.msra.mxu0 0
        %638 = vmatprep.subr.bf16.mxu0 0
        %639 = vmatpush1.bf16.msra.mxu0 0
        %640 = vmatprep.subr.bf16.mxu0 0
        %641 = vmatpush1.bf16.msra.mxu0 0
        %642 = vmatprep.mubr.bf16.mxu0 0
        %643 = vmatmul.mubr.bf16.gmra.mrb[0].mxu0 %v546
        %v644 = vpop.f32.mrb[0].mxu0
        %v645 = vadd.f32 0.0, %v644
        %v646 = vpop.f32.mrb[0].mxu0
        %v647 = vpop.f32.mrb[0].mxu0
        %v648 = vadd.f32 0.0, %v647
        %v649 = vpop.f32.mrb[0].mxu0
        %650 = vmatprep.mubr.bf16.mxu0 0
        %651 = vmatmul.mubr.bf16.gmra.mrb[0].mxu0 %v547
        %v652 = vpop.f32.mrb[0].mxu0
        %v653 = vadd.f32 0.0, %v652
        %v654 = vpop.f32.mrb[0].mxu0
        %v655 = vpop.f32.mrb[0].mxu0
        %v656 = vadd.f32 0.0, %v655
        %v657 = vpop.f32.mrb[0].mxu0
        %658 = vmatprep.mubr.bf16.mxu0 0
        %659 = vmatmul.mubr.bf16.gmra.mrb[0].mxu0 %v548
        %v660 = vpop.f32.mrb[0].mxu0
        %v661 = vadd.f32 0.0, %v660
        %v662 = vpop.f32.mrb[0].mxu0
        %v663 = vpop.f32.mrb[0].mxu0
        %v664 = vadd.f32 0.0, %v663
        %v665 = vpop.f32.mrb[0].mxu0
        %666 = vmatprep.mubr.bf16.mxu0 0
        %667 = vmatmul.mubr.bf16.gmra.mrb[0].mxu0 %v549
        %v668 = vpop.f32.mrb[0].mxu0
        %v669 = vadd.f32 0.0, %v668
        %v670 = vpop.f32.mrb[0].mxu0
        %v671 = vpop.f32.mrb[0].mxu0
        %v672 = vadd.f32 0.0, %v671
        %v673 = vpop.f32.mrb[0].mxu0
        %674 = vmatprep.mubr.bf16.mxu0 0
        %675 = vmatmul.mubr.bf16.gmra.mrb[0].mxu0 %v550
        %v676 = vpop.f32.mrb[0].mxu0
        %v677 = vadd.f32 0.0, %v676
        %v678 = vpop.f32.mrb[0].mxu0
        %v679 = vpop.f32.mrb[0].mxu0
        %v680 = vadd.f32 0.0, %v679
        %v681 = vpop.f32.mrb[0].mxu0
        %682 = vmatprep.mubr.bf16.mxu0 0
        %683 = vmatmul.mubr.bf16.gmra.mrb[0].mxu0 %v551
        %v684 = vpop.f32.mrb[0].mxu0
        %v685 = vadd.f32 0.0, %v684
        %v686 = vpop.f32.mrb[0].mxu0
        %v687 = vpop.f32.mrb[0].mxu0
        %v688 = vadd.f32 0.0, %v687
        %v689 = vpop.f32.mrb[0].mxu0
        %690 = vmatprep.mubr.bf16.mxu0 0
        %691 = vmatmul.mubr.bf16.gmra.mrb[0].mxu0 %v552
        %v692 = vpop.f32.mrb[0].mxu0
        %v693 = vadd.f32 0.0, %v692
        %v694 = vpop.f32.mrb[0].mxu0
        %v695 = vpop.f32.mrb[0].mxu0
        %v696 = vadd.f32 0.0, %v695
        %v697 = vpop.f32.mrb[0].mxu0
        %698 = vmatprep.mubr.bf16.mxu0 0
        %699 = vmatmul.mubr.bf16.gmra.mrb[0].mxu0 %v553
        %v700 = vpop.f32.mrb[0].mxu0
        %v701 = vadd.f32 0.0, %v700
        %v702 = vpop.f32.mrb[0].mxu0
        %v703 = vpop.f32.mrb[0].mxu0
        %v704 = vadd.f32 0.0, %v703
        %v705 = vpop.f32.mrb[0].mxu0
        %706 = vdwg.mxu0
        %v707 = vld [vmem:[#allocation2] sm:$0x1]
        %v708 = vmax.f32 %v645, %v661
        %v709 = vmax.f32 %v648, %v664
        %v710 = vmax.f32 %v653, %v669
        %v711 = vmax.f32 %v656, %v672
        %v712 = vmax.f32 %v708, %v677
        %v713 = vmax.f32 %v709, %v680
        %v714 = vmax.f32 %v710, %v685
        %v715 = vmax.f32 %v711, %v688
        %v716 = vmax.f32 %v712, %v693
        %v717 = vmax.f32 %v713, %v696
        %v718 = vmax.f32 %v714, %v701
        %v719 = vmax.f32 %v715, %v704
        %v720 = vmax.f32 %v716, %v717
        %v721 = vmax.f32 %v718, %v719
        %v722 = vmax.f32 %v720, %v721
        %v723 = vrot.slane %v722, 4
        %v724 = vmax.f32 %v722, %v723
        %v725 = vrot.slane %v724, 2
        %v726 = vmax.f32 %v724, %v725
        %v727 = vrot.slane %v726, 1
        %v728 = vmax.f32 %v726, %v727
        %v729 = vmax.f32 %v707, %v728
        %v730 = vsub.f32 %v707, %v729
        %v731 = vmul.f32 %v730, 1.442695
        %v732 = vpow.pop %v731
        %v734 = vlaneseq
        %v735 = vshrl.u32 %v734, 7
        %v736 = vsub.s32 0, %v735
        %v737 = vrot.slane %v729, %v736
        %v739 = vsub.f32 %v645, %v737
        %v740 = vsub.f32 %v648, %v737
        %v741 = vsub.f32 %v653, %v737
        %v742 = vsub.f32 %v656, %v737
        %v743 = vsub.f32 %v661, %v737
        %v744 = vsub.f32 %v664, %v737
        %v745 = vsub.f32 %v669, %v737
        %v746 = vsub.f32 %v672, %v737
        %v747 = vsub.f32 %v677, %v737
        %v748 = vsub.f32 %v680, %v737
        %v749 = vsub.f32 %v685, %v737
        %v750 = vsub.f32 %v688, %v737
        %v751 = vsub.f32 %v693, %v737
        %v752 = vsub.f32 %v696, %v737
        %v753 = vsub.f32 %v701, %v737
        %v754 = vsub.f32 %v704, %v737
        %v755 = vmul.f32 %v739, 1.442695
        %v756 = vpow.pop %v755
        %v757 = vmul.f32 %v740, 1.442695
        %v758 = vpow.pop %v757
        %v759 = vmul.f32 %v741, 1.442695
        %v760 = vpow.pop %v759
        %v761 = vmul.f32 %v742, 1.442695
        %v762 = vpow.pop %v761
        %v763 = vmul.f32 %v743, 1.442695
        %v764 = vpow.pop %v763
        %v765 = vmul.f32 %v744, 1.442695
        %v766 = vpow.pop %v765
        %v767 = vmul.f32 %v745, 1.442695
        %v768 = vpow.pop %v767
        %v769 = vmul.f32 %v746, 1.442695
        %v770 = vpow.pop %v769
        %v771 = vmul.f32 %v747, 1.442695
        %v772 = vpow.pop %v771
        %v773 = vmul.f32 %v748, 1.442695
        %v774 = vpow.pop %v773
        %v775 = vmul.f32 %v749, 1.442695
        %v776 = vpow.pop %v775
        %v777 = vmul.f32 %v750, 1.442695
        %v778 = vpow.pop %v777
        %v779 = vmul.f32 %v751, 1.442695
        %v780 = vpow.pop %v779
        %v781 = vmul.f32 %v752, 1.442695
        %v782 = vpow.pop %v781
        %v783 = vmul.f32 %v753, 1.442695
        %v784 = vpow.pop %v783
        %v785 = vmul.f32 %v754, 1.442695
        %v786 = vpow.pop %v785
        %v787 = vld [vmem:[#allocation3] sm:$0xff]
        %v788 = vld [vmem:[#allocation3 + $0x8] sm:$0xff]
        %v789 = vld [vmem:[#allocation3 + $0x10] sm:$0xff]
        %v790 = vld [vmem:[#allocation3 + $0x18] sm:$0xff]
        %v791 = vld [vmem:[#allocation3 + $0x20] sm:$0x1]
        %v793 = vlaneseq
        %v794 = vshrl.u32 %v793, 7
        %v795 = vsub.s32 0, %v794
        %v796 = vrot.slane %v732, %v795
        %v798 = vmul.f32 %v796, %v787
        %v799 = vmul.f32 %v796, %v788
        %v800 = vmul.f32 %v796, %v789
        %v801 = vmul.f32 %v796, %v790
        %v802 = vmul.f32 %v796, %v791
        %v803 = vld [vmem:[%s424] sm:$0xf]
        %v804 = vld [vmem:[%s424 + $0x4] sm:$0xf]
        %v805 = vld [vmem:[%s424 + $0x8] sm:$0xf]
        %v806 = vld [vmem:[%s424 + $0xc] sm:$0xf]
        %v807 = vld [vmem:[%s424 + $0x10] sm:$0x1]
        %v808 = vpack.c.bf16 %v758, %v756
        %v809 = vpack.c.bf16 %v762, %v760
        %v810 = vpack.c.bf16 %v766, %v764
        %v811 = vpack.c.bf16 %v770, %v768
        %v812 = vpack.c.bf16 %v774, %v772
        %v813 = vpack.c.bf16 %v778, %v776
        %v814 = vpack.c.bf16 %v782, %v780
        %v815 = vpack.c.bf16 %v786, %v784
        %v821 = vunpack.c.l.b16 %v803
        %v822 = vunpack.c.l.b16 %v804
        %v823 = vunpack.c.l.b16 %v805
        %v824 = vunpack.c.l.b16 %v806
        %v825 = vunpack.c.l.b16 %v807
        %v826 = vpack.c.b16 %v822, %v821
        %v827 = vpack.c.b16 %v824, %v823
        %v828 = vpack.c.b16 %v825, %v825
        %832 = vmatprep.subr.bf16.mxu0 0
        %833 = vmatpush1.bf16.msra.mxu0 %v808
        %834 = vmatprep.subr.bf16.mxu0 0
        %835 = vmatpush1.bf16.msra.mxu0 %v809
        %836 = vmatprep.subr.bf16.mxu0 0
        %837 = vmatpush1.bf16.msra.mxu0 %v810
        %838 = vmatprep.subr.bf16.mxu0 0
        %839 = vmatpush1.bf16.msra.mxu0 %v811
        %840 = vmatprep.subr.bf16.mxu0 0
        %841 = vmatpush1.bf16.msra.mxu0 %v812
        %842 = vmatprep.subr.bf16.mxu0 0
        %843 = vmatpush1.bf16.msra.mxu0 %v813
        %844 = vmatprep.subr.bf16.mxu0 0
        %845 = vmatpush1.bf16.msra.mxu0 %v814
        %846 = vmatprep.subr.bf16.mxu0 0
        %847 = vmatpush1.bf16.msra.mxu0 %v815
        %848 = vmatprep.subr.bf16.mxu0 0
        %849 = vmatpush1.bf16.msra.mxu0 0
        %850 = vmatprep.subr.bf16.mxu0 0
        %851 = vmatpush1.bf16.msra.mxu0 0
        %852 = vmatprep.subr.bf16.mxu0 0
        %853 = vmatpush1.bf16.msra.mxu0 0
        %854 = vmatprep.subr.bf16.mxu0 0
        %855 = vmatpush1.bf16.msra.mxu0 0
        %856 = vmatprep.subr.bf16.mxu0 0
        %857 = vmatpush1.bf16.msra.mxu0 0
        %858 = vmatprep.subr.bf16.mxu0 0
        %859 = vmatpush1.bf16.msra.mxu0 0
        %860 = vmatprep.subr.bf16.mxu0 0
        %861 = vmatpush1.bf16.msra.mxu0 0
        %862 = vmatprep.subr.bf16.mxu0 0
        %863 = vmatpush1.bf16.msra.mxu0 0
        %864 = vmatprep.mubr.bf16.mxu0 0
        %865 = vmatmul.mubr.bf16.gmra.mrb[0].mxu0 %v826
        %v866 = vpop.f32.mrb[0].mxu0
        %v867 = vadd.f32 0.0, %v866
        %v868 = vpop.f32.mrb[0].mxu0
        %v869 = vpop.f32.mrb[0].mxu0
        %v870 = vadd.f32 0.0, %v869
        %v871 = vpop.f32.mrb[0].mxu0
        %872 = vmatprep.mubr.bf16.mxu0 0
        %873 = vmatmul.mubr.bf16.gmra.mrb[0].mxu0 %v827
        %v874 = vpop.f32.mrb[0].mxu0
        %v875 = vadd.f32 0.0, %v874
        %v876 = vpop.f32.mrb[0].mxu0
        %v877 = vpop.f32.mrb[0].mxu0
        %v878 = vadd.f32 0.0, %v877
        %v879 = vpop.f32.mrb[0].mxu0
        %880 = vmatprep.mubr.bf16.mxu0 0
        %881 = vmatmul.mubr.bf16.gmra.mrb[0].mxu0 %v828
        %v882 = vpop.f32.mrb[0].mxu0
        %v883 = vadd.f32 0.0, %v882
        %v884 = vpop.f32.mrb[0].mxu0
        %v885 = vpop.f32.mrb[0].mxu0
        %v886 = vpop.f32.mrb[0].mxu0
        %887 = vdwg.mxu0
        %v888 = vadd.f32 %v798, %v867
        %v889 = vadd.f32 %v799, %v870
        %v890 = vadd.f32 %v800, %v875
        %v891 = vadd.f32 %v801, %v878
        %v892 = vadd.f32 %v802, %v883
        %893 = vst [vmem:[#allocation3] sm:$0xff] %v888
        %894 = vst [vmem:[#allocation3 + $0x8] sm:$0xff] %v889
        %895 = vst [vmem:[#allocation3 + $0x10] sm:$0xff] %v890
        %896 = vst [vmem:[#allocation3 + $0x18] sm:$0xff] %v891
        %897 = vst [vmem:[#allocation3 + $0x20] sm:$0x1] %v892
        %898 = vst [vmem:[#allocation2] sm:$0x1] %v729
        %p899 = scmp.eq.s32.totalorder %s33, 1
        // Predicated region
        $region135: #{tpu_custom_call.1} parent=113 // pred_check
          %p900 = pneg %p899
        $region136: #{tpu_custom_call.1} parent=113 // pred_check_branch
          %902 = sbr.rel (%p900) target = $region138
        $region137: #{tpu_custom_call.1} parent=113 // pred_region
          %v903 = vld [vmem:[#allocation3 + $0x20] sm:$0x1]
          %v904 = vrcp.pop %v903
          %v905 = vld [vmem:[#allocation3] sm:$0xff]
          %v906 = vld [vmem:[#allocation3 + $0x8] sm:$0xff]
          %v907 = vld [vmem:[#allocation3 + $0x10] sm:$0xff]
          %v908 = vld [vmem:[#allocation3 + $0x18] sm:$0xff]
          %v909 = vlaneseq
          %v910 = vshrl.u32 %v909, 7
          %v911 = vsub.s32 0, %v910
          %v912 = vrot.slane %v904, %v911
          %v913 = vmul.f32 %v905, %v912
          %v914 = vmul.f32 %v906, %v912
          %v915 = vmul.f32 %v907, %v912
          %v916 = vmul.f32 %v908, %v912
          %s917 = sld [smem:[#allocation4]]
          %v918 = vstv %s917
          %v919 = vmul.f32 %v918, %v913
          %v920 = vmul.f32 %v918, %v914
          %v921 = vmul.f32 %v918, %v915
          %v922 = vmul.f32 %v918, %v916
          %v923 = vld [vmem:[%s431] sm:$0xf]
          %v924 = vld [vmem:[%s431 + $0x4] sm:$0xf]
          %v925 = vld [vmem:[%s431 + $0x8] sm:$0xf]
          %v926 = vld [vmem:[%s431 + $0xc] sm:$0xf]
          %v927 = vunpack.c.l.bf16 %v923
          %v928 = vunpack.c.l.bf16 %v924
          %v929 = vunpack.c.l.bf16 %v925
          %v930 = vunpack.c.l.bf16 %v926
          %v931 = vadd.f32 %v919, %v927
          %v932 = vadd.f32 %v920, %v928
          %v933 = vadd.f32 %v921, %v929
          %v934 = vadd.f32 %v922, %v930
          %935 = vst [vmem:[%s469] sm:$0xff] %v931
          %936 = vst [vmem:[%s469 + $0x8] sm:$0xff] %v932
          %937 = vst [vmem:[%s469 + $0x10] sm:$0xff] %v933
          %938 = vst [vmem:[%s469 + $0x18] sm:$0xff] %v934
        $region138: #{tpu_custom_call.1} parent=113 // pred_fallthru
          _
        %s939 = sand.u32 %s188, 1
        %s940 = scalar_lea.sflag [#allocation7], %s939
        %s941 = sand.u32 %s188, 1
        %s942 = smul.addr %s941, 32
        %s943 = scalar_lea.vmem [#allocation12], %s942
        // Predicated region
        $region139: #{tpu_custom_call.1} parent=113 // pred_check
          %p944 = pneg %p198
        $region140: #{tpu_custom_call.1} parent=113 // pred_check_branch
          %946 = sbr.rel (%p944) target = $region142
        $region141: #{tpu_custom_call.1} parent=113 // pred_region
          %s948 = ssub.s32 512, 512
          %949 = vsyncadd %s940, %s948
          %s950 = smul.addr %s31, 8
          %s951 = sadd.s32 %s32, %s950
          %s952 = smul.addr %s951, 128
          %s953 = scalar_lea.hbm %s5, %s952
          %s954 = sshll.u32 %s943, 4
          %s955 = int_to_ptr.vmem [resolvable:$true] %s954
          %960 = dma.vmem_to_hbm [thread:$0]  %s955, 512, %s953, %s940, 128, 256, 8
        $region142: #{tpu_custom_call.1} parent=113 // pred_fallthru
          _
      $region114: #{tpu_custom_call.1} parent=5 // pred_fallthru
        _
      %p961 = scmp.le.s32.totalorder 2, %s21
      // Predicated region
      $region143: #{tpu_custom_call.1} parent=5 // pred_check
        %p962 = pneg %p961
      $region144: #{tpu_custom_call.1} parent=5 // pred_check_branch
        %964 = sbr.rel (%p962) target = $region146
      $region145: #{tpu_custom_call.1} parent=5 // pred_region
        %s965 = ssub.s32 %s21, 2
        // Predicated region
        $region147: #{tpu_custom_call.1} parent=145 // pred_check
          %p966 = pneg %p204
        $region148: #{tpu_custom_call.1} parent=145 // pred_check_branch
          %968 = sbr.rel (%p966) target = $region150
        $region149: #{tpu_custom_call.1} parent=145 // pred_region
          %s969 = sand.u32 %s189, 1
          %s970 = scalar_lea.sflag [#allocation7], %s969
          %s971 = sand.u32 %s189, 1
          %s972 = smul.addr %s971, 32
          %s973 = scalar_lea.vmem [#allocation12], %s972
          %974 = dma.done %s970, 512
        $region150: #{tpu_custom_call.1} parent=145 // pred_fallthru
          _
      $region146: #{tpu_custom_call.1} parent=5 // pred_fallthru
        _
    $region6: #{tpu_custom_call.1} parent=1 // loop_footer
      %s25 = sadd.s32 1, %s21
    $region7: #{tpu_custom_call.1} parent=1 // loop_footer_branch
      %20 = sbr.rel target = $region3
    $region8: #{tpu_custom_call.1} parent=1 // loop_exit
      _
    %975 = vsyncpa [#allocation6], 1
    %s976 = scalar_lea.sflag [#allocation6], 1
    %977 = vsyncpa %s976, 1
    %978 = vsyncpa [#allocation9], 1
    %s979 = scalar_lea.sflag [#allocation9], 1
    %980 = vsyncpa %s979, 1
    %981 = vsyncpa [#allocation7], 1
    %s982 = scalar_lea.sflag [#allocation7], 1
    %983 = vsyncpa %s982, 1

</llo_original>
